<compile_context>
chip_gen: v6e
topology: v6e:2x2x1
jax: 0.10.0
libtpu: 0.0.40
codegen_flags: <defaults>
</compile_context>

<pallas_src>
import functools
import math

import jax
import jax.numpy as jnp
from jax import lax
from jax.experimental import pallas as pl
from jax.experimental.pallas import tpu as pltpu


# --------------------------------------------------------------------------- #
# Device-dependent defaults (best effort; safe fallbacks if detection fails).
# --------------------------------------------------------------------------- #
def _device_kind() -> str:
    try:
        return jax.devices()[0].device_kind.lower()
    except Exception:
        return ""


def _default_grid_over_batch() -> bool:
    # Multi-TensorCore chips (v7x dual-TC, v4/v5p megacore) benefit from a
    # parallel batch grid; on single-TC v5e/v6e the extra grid step (~0.35us)
    # costs more than the work it saves at B=2, S=8.
    kind = _device_kind()
    return any(tag in kind for tag in ("v7", "v4", "v5p"))


def _default_compute_dtype():
    # v5e has no bf16 VPU/EUP and these matmuls are MXU-latency bound, so the
    # bf16 casts are pure extra VALU passes there; keep f32 on v5e.
    kind = _device_kind()
    if "v5e" in kind or "v5 lite" in kind or "v5litepod" in kind:
        return jnp.float32
    return jnp.bfloat16


# --------------------------------------------------------------------------- #
# Kernels
# --------------------------------------------------------------------------- #
def _attn_single_block_kernel(x_ref, wqkv_ref, o_ref, *, batch, seq, dim_attn,
                              compute_dtype):
    # x_ref:    (B*S, Dv)         input dtype
    # wqkv_ref: (Dv, 2*Da + Dv)   compute dtype, [Wq/sqrt(Da) | Wk | Wv]
    # o_ref:    (B*S, Dv)         output dtype == input dtype
    bs = batch * seq

    # Fused QKV projection: one MXU matmul over the flattened slab, f32 acc.
    x = x_ref[...].astype(compute_dtype)
    qkv = jnp.dot(x, wqkv_ref[...], preferred_element_type=jnp.float32)

    q = qkv[:, :dim_attn]                       # pre-scaled (fold in wrapper)
    k = qkv[:, dim_attn:2 * dim_attn]
    v = qkv[:, 2 * dim_attn:]

    # Scores: contract the Da axes directly.
    scores = lax.dot_general(
        q.astype(compute_dtype), k.astype(compute_dtype),
        dimension_numbers=(((1,), (1,)), ((), ())),
        preferred_element_type=jnp.float32)     # (BS, BS) f32

    if batch > 1:
        # Block-diagonal mask: token i only attends within its batch element.
        row = lax.broadcasted_iota(jnp.int32, (bs, bs), 0)
        col = lax.broadcasted_iota(jnp.int32, (bs, bs), 1)
        if seq & (seq - 1) == 0:
            same = (row ^ col) < seq            # power-of-two seq: no int divide
        else:
            same = (row // seq) == (col // seq)
        scores = jnp.where(same, scores, -1e30)

    # Numerically stable softmax, normalization deferred past the PV matmul.
    m = jnp.max(scores, axis=-1, keepdims=True)
    e = jnp.exp(scores - m)                                        # (BS, BS) f32
    num = jnp.dot(e.astype(compute_dtype), v.astype(compute_dtype),
                  preferred_element_type=jnp.float32)              # (BS, Dv) f32
    out = num * pl.reciprocal(jnp.sum(e, axis=-1, keepdims=True), approx=True)
    o_ref[...] = out.astype(o_ref.dtype)


def _attn_batched_kernel(x_ref, wqkv_ref, o_ref, *, dim_attn, compute_dtype):
    # One batch element per grid step -> no cross-batch mask needed.
    # x_ref: (1, S, Dv); wqkv_ref: (Dv, 2*Da+Dv); o_ref: (1, S, Dv)
    x = x_ref[0].astype(compute_dtype)                              # (S, Dv)
    qkv = jnp.dot(x, wqkv_ref[...], preferred_element_type=jnp.float32)

    q = qkv[:, :dim_attn]
    k = qkv[:, dim_attn:2 * dim_attn]
    v = qkv[:, 2 * dim_attn:]

    scores = lax.dot_general(
        q.astype(compute_dtype), k.astype(compute_dtype),
        dimension_numbers=(((1,), (1,)), ((), ())),
        preferred_element_type=jnp.float32)                         # (S, S) f32

    m = jnp.max(scores, axis=-1, keepdims=True)
    e = jnp.exp(scores - m)
    num = jnp.dot(e.astype(compute_dtype), v.astype(compute_dtype),
                  preferred_element_type=jnp.float32)               # (S, Dv) f32
    out = num * pl.reciprocal(jnp.sum(e, axis=-1, keepdims=True), approx=True)
    o_ref[...] = out[None, :, :].astype(o_ref.dtype)


# --------------------------------------------------------------------------- #
# Wrapper
# --------------------------------------------------------------------------- #
def attention_block(x, wq, wk, wv, *, grid_over_batch=None, compute_dtype=None):
    """Self-attention path of AttentionBlock (kv=None).

    x: (B, S, Dv); wq/wk: (Dv, Da); wv: (Dv, Dv)  (weights pre-transposed to
    (in, out) so the kernel does plain x @ W).  Returns (B, S, Dv).
    """
    B, S, Dv = x.shape
    Da = wq.shape[1]

    if grid_over_batch is None:
        grid_over_batch = _default_grid_over_batch()
    if compute_dtype is None:
        compute_dtype = _default_compute_dtype()

    # One-time weight transform: fold 1/sqrt(Da) into Wq, fuse [Wq|Wk|Wv] into
    # a single (Dv, 2*Da+Dv) matrix, cast to the MXU compute dtype.
    # (If calling repeatedly with fixed weights, hoist this out of the call.)
    wq_scaled = wq * (1.0 / math.sqrt(Da))
    w_qkv = jnp.concatenate([wq_scaled, wk, wv], axis=1).astype(compute_dtype)

    if grid_over_batch and B > 1:
        kernel = functools.partial(_attn_batched_kernel,
                                   dim_attn=Da, compute_dtype=compute_dtype)
        return pl.pallas_call(
            kernel,
            out_shape=jax.ShapeDtypeStruct((B, S, Dv), x.dtype),
            grid_spec=pltpu.PrefetchScalarGridSpec(
                num_scalar_prefetch=0,
                grid=(B,),
                in_specs=[
                    pl.BlockSpec((1, S, Dv), lambda b: (b, 0, 0)),
                    pl.BlockSpec((Dv, 2 * Da + Dv), lambda b: (0, 0)),
                ],
                out_specs=pl.BlockSpec((1, S, Dv), lambda b: (b, 0, 0)),
            ),
            compiler_params=pltpu.CompilerParams(
                dimension_semantics=("parallel",)),
        )(x, w_qkv)

    BS = B * S
    x2d = x.reshape(BS, Dv)     # free wrapper-side reshape
    kernel = functools.partial(_attn_single_block_kernel,
                               batch=B, seq=S, dim_attn=Da,
                               compute_dtype=compute_dtype)
    out2d = pl.pallas_call(
        kernel,
        out_shape=jax.ShapeDtypeStruct((BS, Dv), x.dtype),
        grid_spec=pltpu.PrefetchScalarGridSpec(
            num_scalar_prefetch=0,
            grid=(1,),
            in_specs=[
                pl.BlockSpec((BS, Dv), lambda i: (0, 0)),
                pl.BlockSpec((Dv, 2 * Da + Dv), lambda i: (0, 0)),
            ],
            out_specs=pl.BlockSpec((BS, Dv), lambda i: (0, 0)),
        ),
        compiler_params=pltpu.CompilerParams(
            dimension_semantics=("arbitrary",)),
    )(x2d, w_qkv)
    return out2d.reshape(B, S, Dv)


def attention_block_ref(x, wq, wk, wv):
    """Pure-JAX f32 reference mirroring the PyTorch forward pass."""
    q = x @ wq
    k = x @ wk
    v = x @ wv
    s = (q @ jnp.swapaxes(k, -1, -2)) / jnp.sqrt(jnp.float32(q.shape[-1]))
    a = jax.nn.softmax(s, axis=-1)
    return a @ v


if __name__ == "__main__":
    # Small shapes consistent with the module: a batch of sequences of feature vectors.
    B, S = 2, 8
    dim_val, dim_attn = 32, 32

    key = jax.random.PRNGKey(0)
    kx, kq, kk, kv_ = jax.random.split(key, 4)

    x = jax.random.normal(kx, (B, S, dim_val), dtype=jnp.float32)
    # nn.Linear(in, out, bias=False) init ~ U(-1/sqrt(in), 1/sqrt(in)), pre-transposed to (in, out).
    bound = 1.0 / math.sqrt(dim_val)
    wq = jax.random.uniform(kq, (dim_val, dim_attn), jnp.float32, -bound, bound)
    wk = jax.random.uniform(kk, (dim_val, dim_attn), jnp.float32, -bound, bound)
    wv = jax.random.uniform(kv_, (dim_val, dim_val), jnp.float32, -bound, bound)

    ref = attention_block_ref(x, wq, wk, wv)

    # Default path (device-dependent structural choice).
    out = jax.block_until_ready(attention_block(x, wq, wk, wv))
    assert out.shape == (B, S, dim_val)
    assert out.dtype == x.dtype
    max_err = float(jnp.max(jnp.abs(out - ref)))
    # bf16 MXU operands + approx reciprocal -> relaxed tolerance vs pure-f32 reference.
    assert jnp.allclose(out, ref, atol=2e-2, rtol=2e-2), f"max abs err = {max_err}"

    # Exercise both structural variants explicitly for coverage.
    out_single = jax.block_until_ready(
        attention_block(x, wq, wk, wv, grid_over_batch=False))
    out_batched = jax.block_until_ready(
        attention_block(x, wq, wk, wv, grid_over_batch=True))
    assert jnp.allclose(out_single, ref, atol=2e-2, rtol=2e-2)
    assert jnp.allclose(out_batched, ref, atol=2e-2, rtol=2e-2)

    print("KERNEL_OK")
</pallas_src>

<mosaic_0001>
module attributes {stable_mosaic.version = 11 : i64} {
  func.func @_attn_single_block_kernel(%arg0: i32, %arg1: memref<16x32xf32, #tpu.memory_space<vmem>>, %arg2: memref<32x96xbf16, #tpu.memory_space<vmem>>, %arg3: memref<16x32xf32, #tpu.memory_space<vmem>>) attributes {dimension_semantics = [#tpu.dimension_semantics<arbitrary>], iteration_bounds = array<i64: 1>, scalar_prefetch = 0 : i64, scratch_operands = 0 : i64, tpu.core_type = #tpu.core_type<tc>, window_params = [{pipeline_mode = #tpu.pipeline_mode<synchronous>, transform_indices = @transform_0, window_bounds = array<i64: 16, 32>}, {pipeline_mode = #tpu.pipeline_mode<synchronous>, transform_indices = @transform_1, window_bounds = array<i64: 32, 96>}, {pipeline_mode = #tpu.pipeline_mode<synchronous>, transform_indices = @transform_2, window_bounds = array<i64: 16, 32>}]} {
    %c0 = arith.constant 0 : index
    %c0_0 = arith.constant 0 : index
    %0 = vector.load %arg1[%c0, %c0_0] : memref<16x32xf32, #tpu.memory_space<vmem>>, vector<16x32xf32>
    %1 = arith.truncf %0 : vector<16x32xf32> to vector<16x32xbf16>
    %c0_1 = arith.constant 0 : index
    %c0_2 = arith.constant 0 : index
    %2 = vector.load %arg2[%c0_1, %c0_2] : memref<32x96xbf16, #tpu.memory_space<vmem>>, vector<32x96xbf16>
    %cst = arith.constant dense<0.000000e+00> : vector<16x96xf32>
    %3 = tpu.matmul %1, %2, %cst {dimension_numbers = #tpu.dot_dimension_numbers<[1], [0], [0], [1], [0, 0, 1, 1], [], []>} : vector<16x32xbf16>, vector<32x96xbf16>, vector<16x96xf32> -> vector<16x96xf32>
    %4 = vector.extract_strided_slice %3 {offsets = [0, 0], sizes = [16, 32], strides = [1, 1]} : vector<16x96xf32> to vector<16x32xf32>
    %5 = vector.extract_strided_slice %3 {offsets = [0, 32], sizes = [16, 32], strides = [1, 1]} : vector<16x96xf32> to vector<16x32xf32>
    %6 = vector.extract_strided_slice %3 {offsets = [0, 64], sizes = [16, 32], strides = [1, 1]} : vector<16x96xf32> to vector<16x32xf32>
    %7 = arith.truncf %4 : vector<16x32xf32> to vector<16x32xbf16>
    %8 = arith.truncf %5 : vector<16x32xf32> to vector<16x32xbf16>
    %cst_3 = arith.constant dense<0.000000e+00> : vector<16x16xf32>
    %9 = tpu.matmul %7, %8, %cst_3 {dimension_numbers = #tpu.dot_dimension_numbers<[1], [1], [0], [0], [0, 0, 1, 0], [], []>} : vector<16x32xbf16>, vector<16x32xbf16>, vector<16x16xf32> -> vector<16x16xf32>
    %10 = tpu.iota {dimensions = array<i32: 0>} : vector<16x16xi32>
    %11 = tpu.iota {dimensions = array<i32: 1>} : vector<16x16xi32>
    %12 = arith.xori %10, %11 : vector<16x16xi32>
    %c8_i32 = arith.constant 8 : i32
    %13 = vector.broadcast %c8_i32 : i32 to vector<16x16xi32>
    %14 = arith.cmpi slt, %12, %13 : vector<16x16xi32>
    %cst_4 = arith.constant -1.000000e+30 : f32
    %15 = vector.broadcast %cst_4 : f32 to vector<16x16xf32>
    %16 = arith.select %14, %9, %15 : vector<16x16xi1>, vector<16x16xf32>
    %cst_5 = arith.constant dense<0xFF800000> : vector<16xf32>
    %17 = vector.multi_reduction <maximumf>, %16, %cst_5 [1] : vector<16x16xf32> to vector<16xf32>
    %18 = vector.shape_cast %17 : vector<16xf32> to vector<16x1xf32>
    %19 = vector.broadcast %18 : vector<16x1xf32> to vector<16x16xf32>
    %20 = arith.subf %16, %19 : vector<16x16xf32>
    %21 = math.exp %20 : vector<16x16xf32>
    %22 = arith.truncf %21 : vector<16x16xf32> to vector<16x16xbf16>
    %23 = arith.truncf %6 : vector<16x32xf32> to vector<16x32xbf16>
    %cst_6 = arith.constant dense<0.000000e+00> : vector<16x32xf32>
    %24 = tpu.matmul %22, %23, %cst_6 {dimension_numbers = #tpu.dot_dimension_numbers<[1], [0], [0], [1], [0, 0, 1, 1], [], []>} : vector<16x16xbf16>, vector<16x32xbf16>, vector<16x32xf32> -> vector<16x32xf32>
    %cst_7 = arith.constant dense<0.000000e+00> : vector<16xf32>
    %25 = vector.multi_reduction <add>, %21, %cst_7 [1] : vector<16x16xf32> to vector<16xf32>
    %26 = vector.shape_cast %25 : vector<16xf32> to vector<16x1xf32>
    %27 = tpu.reciprocal %26 {approx = true} : vector<16x1xf32> -> vector<16x1xf32>
    %28 = vector.broadcast %27 : vector<16x1xf32> to vector<16x32xf32>
    %29 = arith.mulf %24, %28 : vector<16x32xf32>
    %c0_8 = arith.constant 0 : index
    %c0_9 = arith.constant 0 : index
    %30 = vector.load %arg3[%c0_8, %c0_9] : memref<16x32xf32, #tpu.memory_space<vmem>>, vector<16x32xf32>
    tpu.vector_store %arg3[%c0_8, %c0_9], %29 {strides = array<i32>} : memref<16x32xf32, #tpu.memory_space<vmem>>, vector<16x32xf32>,
    return
  }
  func.func @transform_0(%arg0: i32) -> (i32, i32) {
    %c0_i32 = arith.constant 0 : i32
    %c0_i32_0 = arith.constant 0 : i32
    %c0_i32_1 = arith.constant 0 : i32
    return %c0_i32, %c0_i32_0 : i32, i32
  }
  func.func @transform_1(%arg0: i32) -> (i32, i32) {
    %c0_i32 = arith.constant 0 : i32
    %c0_i32_0 = arith.constant 0 : i32
    %c0_i32_1 = arith.constant 0 : i32
    return %c0_i32, %c0_i32_0 : i32, i32
  }
  func.func @transform_2(%arg0: i32) -> (i32, i32) {
    %c0_i32 = arith.constant 0 : i32
    %c0_i32_0 = arith.constant 0 : i32
    %c0_i32_1 = arith.constant 0 : i32
    return %c0_i32, %c0_i32_0 : i32, i32
  }
}

</mosaic_0001>

<llo_original>
// kernel: tpu_custom_call.1
$region0: #{tpu_custom_call.1}
  #allocation0 [shape = 'u32[]', space=smem, size = 0x4, offset = 0x4, fixed_abs, tag = 'smem constant byte address 0x4 - core index']
  #allocation1 [shape = 'u32[144,128]{1,0:T(1,128)}', space=vmem, size = 0x12000, scoped, tag = 'internal scratch']
  %s0 = inlined_call_operand.hbm [shape: f32[16,32], index: 0, kind: input, shape index: {}]
  %s1 = inlined_call_operand.hbm [shape: bf16[32,96], index: 1, kind: input, shape index: {}]
  %s2 = inlined_call_operand.hbm [shape: f32[16,32], index: 2, kind: output, shape index: {}]
  %s3 = sld [smem:[#allocation0]]
  $region26: #{tpu_custom_call.1} parent=0
    _
  %s5 = ssub.s32 1, %s3
  %s6 = scalar_select 0, %s5, %s3
  $region1: #{tpu_custom_call.1} parent=0
    #allocation2 [shape = 'u8[8192]{0}', space=vmem, size = 0x2000, scoped, tag = 'input window, operand 0, single buffered']
    #allocation3 [shape = 's32[1]{0}', space=sflag, size = 0x4, scoped, tag = 'scoped memory for tpu_custom_call.1']
    #allocation4 [shape = 's32[1]{0}', space=sflag, size = 0x4, scoped, tag = 'scoped memory for tpu_custom_call.1']
    #allocation5 [shape = 'u8[8192]{0}', space=vmem, size = 0x2000, scoped, tag = 'input window, operand 1, single buffered']
    #allocation6 [shape = 's32[1]{0}', space=sflag, size = 0x4, scoped, tag = 'scoped memory for tpu_custom_call.1']
    #allocation7 [shape = 'u8[8192]{0}', space=vmem, size = 0x2000, scoped, tag = 'output window, operand 0, single buffered']
    %7 = vsyncpa [#allocation3], 0
    %8 = vsyncpa [#allocation6], 0
    %9 = vsyncpa [#allocation4], 0
    // Predicated region
    $region2: #{tpu_custom_call.1} parent=1 // pred_check
      _
    $region3: #{tpu_custom_call.1} parent=1 // pred_check_branch
      %11 = sbr.rel (0) target = $region5
    $region4: #{tpu_custom_call.1} parent=1 // pred_region
      %s13 = ssub.s32 256, 256
      %14 = vsyncadd [#allocation3], %s13
      %s15 = sshll.u32 [#allocation2], 4
      %s16 = int_to_ptr.vmem [resolvable:$true] %s15
      %21 = dma.hbm_to_vmem [thread:$0]  %s0, 256, %s16, [#allocation3], 128, 128, 8
    $region5: #{tpu_custom_call.1} parent=1 // pred_fallthru
      _
    // Predicated region
    $region6: #{tpu_custom_call.1} parent=1 // pred_check
      _
    $region7: #{tpu_custom_call.1} parent=1 // pred_check_branch
      %23 = sbr.rel (0) target = $region9
    $region8: #{tpu_custom_call.1} parent=1 // pred_region
      %s25 = ssub.s32 256, 256
      %26 = vsyncadd [#allocation6], %s25
      %s27 = sshll.u32 [#allocation5], 4
      %s28 = int_to_ptr.vmem [resolvable:$true] %s27
      %33 = dma.hbm_to_vmem [thread:$0]  %s1, 256, %s28, [#allocation6], 64, 64, 4
    $region9: #{tpu_custom_call.1} parent=1 // pred_fallthru
      _
    // Predicated region
    $region10: #{tpu_custom_call.1} parent=1 // pred_check
      _
    $region11: #{tpu_custom_call.1} parent=1 // pred_check_branch
      %35 = sbr.rel (0) target = $region13
    $region12: #{tpu_custom_call.1} parent=1 // pred_region
      %36 = dma.done [#allocation3], 256
    $region13: #{tpu_custom_call.1} parent=1 // pred_fallthru
      _
    // Predicated region
    $region14: #{tpu_custom_call.1} parent=1 // pred_check
      _
    $region15: #{tpu_custom_call.1} parent=1 // pred_check_branch
      %38 = sbr.rel (0) target = $region17
    $region16: #{tpu_custom_call.1} parent=1 // pred_region
      %39 = dma.done [#allocation6], 256
    $region17: #{tpu_custom_call.1} parent=1 // pred_fallthru
      _
    %v41 = vld [vmem:[#allocation2] sm:$0xff]
    %v42 = vld [vmem:[#allocation2 + $0x8] sm:$0xff]
    %v43 = vpack.c.bf16 %v42, %v41
    %v44 = vld [vmem:[#allocation5] sm:$0xf]
    %v45 = vld [vmem:[#allocation5 + $0x4] sm:$0xf]
    %v46 = vld [vmem:[#allocation5 + $0x8] sm:$0xf]
    %v47 = vld [vmem:[#allocation5 + $0xc] sm:$0xf]
    %v52 = vunpack.c.l.b16 %v44
    %v53 = vunpack.c.l.b16 %v45
    %v54 = vunpack.c.l.b16 %v46
    %v55 = vunpack.c.l.b16 %v47
    %v56 = vpack.c.b16 %v53, %v52
    %v57 = vpack.c.b16 %v55, %v54
    %vm60 = vcmask 261120
    %v62 = vsel %vm60, %v43, 0
    %64 = vmatprep.subr.bf16.mxu0 0
    %65 = vmatpush1.bf16.msra.mxu0 0
    %66 = vmatprep.subr.bf16.mxu0 0
    %67 = vmatpush1.bf16.msra.mxu0 0
    %68 = vmatprep.subr.bf16.mxu0 0
    %69 = vmatpush1.bf16.msra.mxu0 0
    %70 = vmatprep.subr.bf16.mxu0 0
    %71 = vmatpush1.bf16.msra.mxu0 0
    %72 = vmatprep.subr.bf16.mxu0 0
    %73 = vmatpush1.bf16.msra.mxu0 0
    %74 = vmatprep.subr.bf16.mxu0 0
    %75 = vmatpush1.bf16.msra.mxu0 0
    %76 = vmatprep.subr.bf16.mxu0 0
    %77 = vmatpush1.bf16.msra.mxu0 %v57
    %78 = vmatprep.subr.bf16.mxu0 0
    %79 = vmatpush1.bf16.msra.mxu0 %v56
    %80 = vmatprep.subr.bf16.mxu0 0
    %81 = vmatpush2.bf16.msra.mxu0 0
    %82 = vmatprep.subr.bf16.mxu0 0
    %83 = vmatpush2.bf16.msra.mxu0 0
    %84 = vmatprep.subr.bf16.mxu0 0
    %85 = vmatpush2.bf16.msra.mxu0 0
    %86 = vmatprep.subr.bf16.mxu0 0
    %87 = vmatpush2.bf16.msra.mxu0 0
    %88 = vmatprep.subr.bf16.mxu0 0
    %89 = vmatpush2.bf16.msra.mxu0 0
    %90 = vmatprep.subr.bf16.mxu0 0
    %91 = vmatpush2.bf16.msra.mxu0 0
    %92 = vmatprep.subr.bf16.mxu0 0
    %93 = vmatpush2.bf16.msra.mxu0 0
    %94 = vmatprep.subr.bf16.mxu0 0
    %95 = vmatpush2.bf16.msra.mxu0 0
    %96 = vmatprep.mubr.bf16.mxu0 0
    %97 = vmatmul.mubr.bf16.gmra.mxu0 %v62
    %v98 = vpop.f32.mrf.mxu0
    %v99 = vadd.f32 0.0, %v98
    %v100 = vpop.f32.mrf.mxu0
    %v101 = vpop.f32.mrf.mxu0
    %v102 = vadd.f32 0.0, %v101
    %v103 = vpop.f32.mrf.mxu0
    %104 = vdwg.mxu0
    %v105 = vpack.c.bf16 %v102, %v99
    %107 = vrot.lane.b32.xlu0 %v105, 96
    %v108 = vpop.permute.xlu0 %107
    %v110 = vsel %vm60, %v105, 0
    %v113 = vsel %vm60, %v108, 0
    %115 = vmatprep.subr.bf16.mxu0 0
    %116 = vmatpush1.bf16.xpose.msra.mxu0 0
    %117 = vmatprep.subr.bf16.mxu0 0
    %118 = vmatpush1.bf16.xpose.msra.mxu0 0
    %119 = vmatprep.subr.bf16.mxu0 0
    %120 = vmatpush1.bf16.xpose.msra.mxu0 0
    %121 = vmatprep.subr.bf16.mxu0 0
    %122 = vmatpush1.bf16.xpose.msra.mxu0 0
    %123 = vmatprep.subr.bf16.mxu0 0
    %124 = vmatpush1.bf16.xpose.msra.mxu0 0
    %125 = vmatprep.subr.bf16.mxu0 0
    %126 = vmatpush1.bf16.xpose.msra.mxu0 0
    %127 = vmatprep.subr.bf16.mxu0 0
    %128 = vmatpush1.bf16.xpose.msra.mxu0 0
    %129 = vmatprep.subr.bf16.mxu0 0
    %130 = vmatpush1.bf16.xpose.msra.mxu0 %v113
    %131 = vmatprep.subr.bf16.mxu0 0
    %132 = vmatpush2.bf16.xpose.msra.mxu0 0
    %133 = vmatprep.subr.bf16.mxu0 0
    %134 = vmatpush2.bf16.xpose.msra.mxu0 0
    %135 = vmatprep.subr.bf16.mxu0 0
    %136 = vmatpush2.bf16.xpose.msra.mxu0 0
    %137 = vmatprep.subr.bf16.mxu0 0
    %138 = vmatpush2.bf16.xpose.msra.mxu0 0
    %139 = vmatprep.subr.bf16.mxu0 0
    %140 = vmatpush2.bf16.xpose.msra.mxu0 0
    %141 = vmatprep.subr.bf16.mxu0 0
    %142 = vmatpush2.bf16.xpose.msra.mxu0 0
    %143 = vmatprep.subr.bf16.mxu0 0
    %144 = vmatpush2.bf16.xpose.msra.mxu0 0
    %145 = vmatprep.subr.bf16.mxu0 0
    %146 = vmatpush2.bf16.xpose.msra.mxu0 0
    %147 = vmatprep.mubr.bf16.mxu0 0
    %148 = vmatmul.mubr.bf16.gmra.mxu0 %v110
    %v149 = vpop.f32.mrf.mxu0
    %v150 = vadd.f32 0.0, %v149
    %v151 = vpop.f32.mrf.mxu0
    %v152 = vpop.f32.mrf.mxu0
    %v153 = vadd.f32 0.0, %v152
    %v154 = vpop.f32.mrf.mxu0
    %155 = vdwg.mxu0
    %v156 = vlaneseq
    %v157 = vshrl.u32 %v156, 7
    %v158 = vadd.s32 %v157, 8
    %v159 = vlaneseq
    %v160 = vand.u32 %v159, 127
    %v161 = vxor.u32 %v157, %v160
    %v162 = vxor.u32 %v158, %v160
    %vm163 = vcmp.lt.s32.totalorder %v161, 8
    %vm164 = vcmp.lt.s32.totalorder %v162, 8
    %v165 = vsel %vm163, %v150, -1e+30
    %v166 = vsel %vm164, %v153, -1e+30
    %vm167 = vcmask 130048
    %v168 = vsel %vm167, %v165, -inf
    %169 = vmax.xlane.f32.xlu0 %v168
    %v170 = vpop.xlane.xlu0 %169
    %v171 = vsel %vm167, %v166, -inf
    %172 = vmax.xlane.f32.xlu0 %v171
    %v173 = vpop.xlane.xlu0 %172
    %v174 = vsub.f32 %v165, %v170
    %v175 = vsub.f32 %v166, %v173
    %v176 = vmul.f32 %v174, 1.442695
    %v177 = vpow.pop %v176
    %v178 = vmul.f32 %v175, 1.442695
    %v179 = vpow.pop %v178
    %v180 = vpack.c.bf16 %v179, %v177
    %181 = vrot.lane.b32.xlu0 %v105, 64
    %v182 = vpop.permute.xlu0 %181
    %v185 = vsel %vm167, %v180, 0
    %187 = vmatprep.subr.bf16.mxu0 0
    %188 = vmatpush1.bf16.msra.mxu0 0
    %189 = vmatprep.subr.bf16.mxu0 0
    %190 = vmatpush1.bf16.msra.mxu0 0
    %191 = vmatprep.subr.bf16.mxu0 0
    %192 = vmatpush1.bf16.msra.mxu0 0
    %193 = vmatprep.subr.bf16.mxu0 0
    %194 = vmatpush1.bf16.msra.mxu0 0
    %195 = vmatprep.subr.bf16.mxu0 0
    %196 = vmatpush1.bf16.msra.mxu0 0
    %197 = vmatprep.subr.bf16.mxu0 0
    %198 = vmatpush1.bf16.msra.mxu0 0
    %199 = vmatprep.subr.bf16.mxu0 0
    %200 = vmatpush1.bf16.msra.mxu0 0
    %201 = vmatprep.subr.bf16.mxu0 0
    %202 = vmatpush1.bf16.msra.mxu0 %v182
    %203 = vmatprep.subr.bf16.mxu0 0
    %204 = vmatpush2.bf16.msra.mxu0 0
    %205 = vmatprep.subr.bf16.mxu0 0
    %206 = vmatpush2.bf16.msra.mxu0 0
    %207 = vmatprep.subr.bf16.mxu0 0
    %208 = vmatpush2.bf16.msra.mxu0 0
    %209 = vmatprep.subr.bf16.mxu0 0
    %210 = vmatpush2.bf16.msra.mxu0 0
    %211 = vmatprep.subr.bf16.mxu0 0
    %212 = vmatpush2.bf16.msra.mxu0 0
    %213 = vmatprep.subr.bf16.mxu0 0
    %214 = vmatpush2.bf16.msra.mxu0 0
    %215 = vmatprep.subr.bf16.mxu0 0
    %216 = vmatpush2.bf16.msra.mxu0 0
    %217 = vmatprep.subr.bf16.mxu0 0
    %218 = vmatpush2.bf16.msra.mxu0 0
    %219 = vmatprep.mubr.bf16.mxu0 0
    %220 = vmatmul.mubr.bf16.gmra.mxu0 %v185
    %v221 = vpop.f32.mrf.mxu0
    %v222 = vadd.f32 0.0, %v221
    %v223 = vpop.f32.mrf.mxu0
    %v224 = vpop.f32.mrf.mxu0
    %v225 = vadd.f32 0.0, %v224
    %v226 = vpop.f32.mrf.mxu0
    %227 = vdwg.mxu0
    %v228 = vsel %vm167, %v177, 0.0
    %229 = vadd.xlane.f32.xlu0 %v228
    %v230 = vpop.xlane.xlu0 %229
    %v231 = vsel %vm167, %v179, 0.0
    %232 = vadd.xlane.f32.xlu0 %v231
    %v233 = vpop.xlane.xlu0 %232
    %v234 = vrcp.pop %v230
    %v235 = vrcp.pop %v233
    %v236 = vmul.f32 %v222, %v234
    %v237 = vmul.f32 %v225, %v235
    %238 = vst.msk [vmem:[#allocation7] sm:$0xff] %vm60, %v236
    %239 = vst.msk [vmem:[#allocation7 + $0x8] sm:$0xff] %vm60, %v237
    // Predicated region
    $region18: #{tpu_custom_call.1} parent=1 // pred_check
      _
    $region19: #{tpu_custom_call.1} parent=1 // pred_check_branch
      %241 = sbr.rel (0) target = $region21
    $region20: #{tpu_custom_call.1} parent=1 // pred_region
      %s243 = ssub.s32 256, 256
      %244 = vsyncadd [#allocation4], %s243
      %s245 = sshll.u32 [#allocation7], 4
      %s246 = int_to_ptr.vmem [resolvable:$true] %s245
      %251 = dma.vmem_to_hbm [thread:$0]  %s246, 256, %s2, [#allocation4], 128, 128, 8
    $region21: #{tpu_custom_call.1} parent=1 // pred_fallthru
      _
    // Predicated region
    $region22: #{tpu_custom_call.1} parent=1 // pred_check
      _
    $region23: #{tpu_custom_call.1} parent=1 // pred_check_branch
      %253 = sbr.rel (0) target = $region25
    $region24: #{tpu_custom_call.1} parent=1 // pred_region
      %254 = dma.done [#allocation4], 256
    $region25: #{tpu_custom_call.1} parent=1 // pred_fallthru
      _
    %255 = vsyncpa [#allocation3], 1
    %256 = vsyncpa [#allocation6], 1
    %257 = vsyncpa [#allocation4], 1

</llo_original>
